<compile_context>
chip_gen: v5e
topology: v5e:2x2
jax: 0.10.0
libtpu: 0.0.40
codegen_flags: <defaults>
</compile_context>

<pallas_src>
import jax
import jax.numpy as jnp
from jax.experimental import pallas as pl
from jax.experimental.pallas import tpu as pltpu

H_PAD = 128  # TPU lane width; hidden dims are zero-padded to this


def _critic_kernel(x_ref, w1_ref, b1_ref, w2_ref, b2_ref, wq_ref, bq_ref, o_ref):
    # fc1: single fused (tb, d_in) @ (d_in, 128) bf16 MXU matmul, f32 accumulate.
    h1 = jnp.dot(x_ref[...], w1_ref[...], preferred_element_type=jnp.float32)
    h1 = jnp.maximum(h1 + b1_ref[...], 0.0)            # bias + ReLU in f32 (VPU)

    # fc2: bf16 MXU matmul (re-quantize h1), f32 accumulate, f32 bias + ReLU.
    h2 = jnp.dot(h1.astype(jnp.bfloat16), w2_ref[...],
                 preferred_element_type=jnp.float32)
    h2 = jnp.maximum(h2 + b2_ref[...], 0.0)

    # Final (H, 1) linear as VPU multiply + lane reduction; an MXU matmul here
    # would use only 1 of its 128/256 output columns.
    q = jnp.sum(h2 * wq_ref[...], axis=-1, keepdims=True) + bq_ref[...]
    o_ref[...] = q.astype(o_ref.dtype)


def _round_up(x, m):
    return ((x + m - 1) // m) * m


def critic_forward(states, actions, params, *, block_b=1024):
    """states / actions: lists of (B, d_i) f32 arrays.  Returns (B, 1) f32 Q-values."""
    inputs = list(states) + list(actions)
    B = int(inputs[0].shape[0])

    # torch.cat(states + actions, dim=1) done once in the wrapper: costs only
    # ~B*d_in bytes of HBM and lets fc1 be a single MXU matmul per tile.
    x = jnp.concatenate(inputs, axis=1).astype(jnp.bfloat16)
    d_in = int(x.shape[1])

    w1, b1, w2, b2, wq, bq = params
    h1d, h2d = int(w1.shape[1]), int(w2.shape[1])
    assert h1d <= H_PAD and h2d <= H_PAD, "hidden dims must be <= 128"

    # Zero-pad hidden dims to 128 lanes (exact: ReLU(0)=0, zero rows/cols add 0).
    w1p = jnp.pad(w1, ((0, 0), (0, H_PAD - h1d))).astype(jnp.bfloat16)   # (d_in, 128)
    b1p = jnp.pad(b1, ((0, 0), (0, H_PAD - h1d)))                        # (1, 128) f32
    w2p = jnp.pad(w2, ((0, H_PAD - h1d), (0, H_PAD - h2d))).astype(jnp.bfloat16)
    b2p = jnp.pad(b2, ((0, 0), (0, H_PAD - h2d)))                        # (1, 128) f32
    wqp = jnp.pad(wq.T, ((0, 0), (0, H_PAD - h2d)))                      # (1, 128) f32
    bqp = bq.reshape(1, 1).astype(jnp.float32)                           # (1, 1)

    # Batch tile: multiple of 8 sublanes, <= block_b (capped at 8192).
    block_b = min(int(block_b), 8192)
    tb = min(block_b, _round_up(B, 8))
    # v7x megacore: keep >= 2 grid steps when a large batch would otherwise
    # collapse to one tile, so dimension_semantics=("parallel",) can shard the
    # batch axis across both TensorCores.  Harmless extra step on v5e/v6e.
    if B >= 1024 and _round_up(B, 8) <= block_b:
        tb = _round_up((B + 1) // 2, 8)
    b_pad = _round_up(B, tb)
    if b_pad != B:
        # Padded rows produce garbage Q (bias propagates through ReLU); they
        # are sliced off below and must never be consumed otherwise.
        x = jnp.pad(x, ((0, b_pad - B), (0, 0)))
    grid = (b_pad // tb,)

    resident = lambda i: (0, 0)   # constant block index -> stays VMEM-resident
    in_specs = [
        pl.BlockSpec((tb, d_in), lambda i: (i, 0)),     # streamed activations
        pl.BlockSpec((d_in, H_PAD), resident),          # w1 (bf16)
        pl.BlockSpec((1, H_PAD), resident),             # b1
        pl.BlockSpec((H_PAD, H_PAD), resident),         # w2 (bf16)
        pl.BlockSpec((1, H_PAD), resident),             # b2
        pl.BlockSpec((1, H_PAD), resident),             # wq (row vector)
        pl.BlockSpec((1, 1), resident),                 # bq
    ]
    out_spec = pl.BlockSpec((tb, 1), lambda i: (i, 0))

    # VMEM budget: double-buffered streamed tiles + resident weights + f32 temps.
    vmem_bytes = (
        2 * tb * d_in * 2                      # bf16 input tiles (x2 buffers)
        + 2 * tb * 4                           # f32 output tiles (x2 buffers)
        + 2 * (d_in + H_PAD) * H_PAD * 2       # bf16 w1 + w2 (x2 buffers)
        + 2 * 3 * H_PAD * 4 + 8                # biases / wq / bq
        + 4 * tb * H_PAD * 4                   # f32 h1/h2 temporaries (generous)
    )
    vmem_limit = int(min(max(2 * vmem_bytes, 16 * 1024 * 1024), 48 * 1024 * 1024))

    cost = pl.CostEstimate(
        flops=2 * b_pad * (d_in * H_PAD + H_PAD * H_PAD + H_PAD),
        transcendentals=0,
        bytes_accessed=(2 * b_pad * d_in + 4 * b_pad
                        + 2 * (d_in + H_PAD) * H_PAD + 4 * (3 * H_PAD + 1)),
    )

    out = pl.pallas_call(
        _critic_kernel,
        out_shape=jax.ShapeDtypeStruct((b_pad, 1), jnp.float32),
        grid=grid,
        in_specs=in_specs,
        out_specs=out_spec,
        compiler_params=pltpu.CompilerParams(
            dimension_semantics=("parallel",),       # megacore sharding on v7x
            vmem_limit_bytes=vmem_limit,
        ),
        cost_estimate=cost,
    )(x, w1p, b1p, w2p, b2p, wqp, bqp)
    return out[:B]


def init_params(key, state_dims, action_dims, fc1_dims=64, fc2_dims=64):
    """PyTorch-style uniform(-1/sqrt(fan_in), 1/sqrt(fan_in)) init.

    Weights are (in_features, out_features) so the kernel computes x @ W.
    """
    d_in = sum(state_dims) + action_dims
    dims = [(d_in, fc1_dims), (fc1_dims, fc2_dims), (fc2_dims, 1)]
    params = []
    for (fan_in, fan_out) in dims:
        key, kw, kb = jax.random.split(key, 3)
        bound = 1.0 / jnp.sqrt(jnp.float32(fan_in))
        w = jax.random.uniform(kw, (fan_in, fan_out), jnp.float32, -bound, bound)
        b = jax.random.uniform(kb, (1, fan_out), jnp.float32, -bound, bound)
        params += [w, b]
    return tuple(params)


def critic_reference(states, actions, params):
    """Pure-JAX f32 reference for validation (mirrors the PyTorch module)."""
    x = jnp.concatenate(list(states) + list(actions), axis=1)
    w1, b1, w2, b2, wq, bq = params
    h1 = jnp.maximum(x @ w1 + b1, 0.0)
    h2 = jnp.maximum(h1 @ w2 + b2, 0.0)
    return h2 @ wq + bq


if __name__ == "__main__":
    key = jax.random.PRNGKey(0)

    # Small MADDPG-style setup: 3 agents, per-agent state dims, total action dim.
    state_dims = [6, 5, 7]                      # sum = 18
    per_agent_action_dims = [2, 2, 2]
    action_dims = sum(per_agent_action_dims)    # 6  -> d_in = 24
    batch = 8

    key, kp = jax.random.split(key)
    params = init_params(kp, state_dims, action_dims, fc1_dims=64, fc2_dims=64)

    states = []
    for d in state_dims:
        key, k = jax.random.split(key)
        states.append(jax.random.normal(k, (batch, d), jnp.float32))
    actions = []
    for d in per_agent_action_dims:
        key, k = jax.random.split(key)
        actions.append(jax.random.normal(k, (batch, d), jnp.float32))

    q = critic_forward(states, actions, params)
    q = jax.block_until_ready(q)

    q_ref = critic_reference(states, actions, params)
    assert q.shape == (batch, 1), q.shape
    # bf16 matmul operands (f32 accumulate / bias / ReLU) -> loosened tolerance.
    assert jnp.allclose(q, q_ref, atol=5e-2, rtol=5e-2), (q, q_ref)

    print("KERNEL_OK")
</pallas_src>

<mosaic_0001>
module attributes {stable_mosaic.version = 11 : i64} {
  func.func @_critic_kernel(%arg0: i32, %arg1: memref<8x24xbf16, #tpu.memory_space<vmem>>, %arg2: memref<24x128xbf16, #tpu.memory_space<vmem>>, %arg3: memref<1x128xf32, #tpu.memory_space<vmem>>, %arg4: memref<128x128xbf16, #tpu.memory_space<vmem>>, %arg5: memref<1x128xf32, #tpu.memory_space<vmem>>, %arg6: memref<1x128xf32, #tpu.memory_space<vmem>>, %arg7: memref<1x1xf32, #tpu.memory_space<vmem>>, %arg8: memref<8x1xf32, #tpu.memory_space<vmem>>) attributes {dimension_semantics = [#tpu.dimension_semantics<parallel>], iteration_bounds = array<i64: 1>, scalar_prefetch = 0 : i64, scratch_operands = 0 : i64, tpu.core_type = #tpu.core_type<tc>, window_params = [{transform_indices = @transform_0, window_bounds = array<i64: 8, 24>}, {pipeline_mode = #tpu.pipeline_mode<synchronous>, transform_indices = @transform_1, window_bounds = array<i64: 24, 128>}, {pipeline_mode = #tpu.pipeline_mode<synchronous>, transform_indices = @transform_2, window_bounds = array<i64: 1, 128>}, {pipeline_mode = #tpu.pipeline_mode<synchronous>, transform_indices = @transform_3, window_bounds = array<i64: 128, 128>}, {pipeline_mode = #tpu.pipeline_mode<synchronous>, transform_indices = @transform_4, window_bounds = array<i64: 1, 128>}, {pipeline_mode = #tpu.pipeline_mode<synchronous>, transform_indices = @transform_5, window_bounds = array<i64: 1, 128>}, {pipeline_mode = #tpu.pipeline_mode<synchronous>, transform_indices = @transform_6, window_bounds = array<i64: 1, 1>}, {transform_indices = @transform_7, window_bounds = array<i64: 8, 1>}]} {
    %c0 = arith.constant 0 : index
    %c0_0 = arith.constant 0 : index
    %0 = vector.load %arg1[%c0, %c0_0] : memref<8x24xbf16, #tpu.memory_space<vmem>>, vector<8x24xbf16>
    %c0_1 = arith.constant 0 : index
    %c0_2 = arith.constant 0 : index
    %1 = vector.load %arg2[%c0_1, %c0_2] : memref<24x128xbf16, #tpu.memory_space<vmem>>, vector<24x128xbf16>
    %cst = arith.constant dense<0.000000e+00> : vector<8x128xf32>
    %2 = tpu.matmul %0, %1, %cst {dimension_numbers = #tpu.dot_dimension_numbers<[1], [0], [0], [1], [0, 0, 1, 1], [], []>} : vector<8x24xbf16>, vector<24x128xbf16>, vector<8x128xf32> -> vector<8x128xf32>
    %c0_3 = arith.constant 0 : index
    %c0_4 = arith.constant 0 : index
    %3 = vector.load %arg3[%c0_3, %c0_4] : memref<1x128xf32, #tpu.memory_space<vmem>>, vector<1x128xf32>
    %4 = vector.broadcast %3 : vector<1x128xf32> to vector<8x128xf32>
    %5 = arith.addf %2, %4 : vector<8x128xf32>
    %cst_5 = arith.constant 0.000000e+00 : f32
    %6 = vector.broadcast %cst_5 : f32 to vector<8x128xf32>
    %7 = arith.maximumf %5, %6 : vector<8x128xf32>
    %8 = arith.truncf %7 : vector<8x128xf32> to vector<8x128xbf16>
    %c0_6 = arith.constant 0 : index
    %c0_7 = arith.constant 0 : index
    %9 = vector.load %arg4[%c0_6, %c0_7] : memref<128x128xbf16, #tpu.memory_space<vmem>>, vector<128x128xbf16>
    %cst_8 = arith.constant dense<0.000000e+00> : vector<8x128xf32>
    %10 = tpu.matmul %8, %9, %cst_8 {dimension_numbers = #tpu.dot_dimension_numbers<[1], [0], [0], [1], [0, 0, 1, 1], [], []>} : vector<8x128xbf16>, vector<128x128xbf16>, vector<8x128xf32> -> vector<8x128xf32>
    %c0_9 = arith.constant 0 : index
    %c0_10 = arith.constant 0 : index
    %11 = vector.load %arg5[%c0_9, %c0_10] : memref<1x128xf32, #tpu.memory_space<vmem>>, vector<1x128xf32>
    %12 = vector.broadcast %11 : vector<1x128xf32> to vector<8x128xf32>
    %13 = arith.addf %10, %12 : vector<8x128xf32>
    %cst_11 = arith.constant 0.000000e+00 : f32
    %14 = vector.broadcast %cst_11 : f32 to vector<8x128xf32>
    %15 = arith.maximumf %13, %14 : vector<8x128xf32>
    %c0_12 = arith.constant 0 : index
    %c0_13 = arith.constant 0 : index
    %16 = vector.load %arg6[%c0_12, %c0_13] : memref<1x128xf32, #tpu.memory_space<vmem>>, vector<1x128xf32>
    %17 = vector.broadcast %16 : vector<1x128xf32> to vector<8x128xf32>
    %18 = arith.mulf %15, %17 : vector<8x128xf32>
    %cst_14 = arith.constant dense<0.000000e+00> : vector<8xf32>
    %19 = vector.multi_reduction <add>, %18, %cst_14 [1] : vector<8x128xf32> to vector<8xf32>
    %20 = vector.shape_cast %19 : vector<8xf32> to vector<8x1xf32>
    %c0_15 = arith.constant 0 : index
    %c0_16 = arith.constant 0 : index
    %21 = vector.load %arg7[%c0_15, %c0_16] : memref<1x1xf32, #tpu.memory_space<vmem>>, vector<1x1xf32>
    %22 = vector.broadcast %21 : vector<1x1xf32> to vector<8x1xf32>
    %23 = arith.addf %20, %22 : vector<8x1xf32>
    %c0_17 = arith.constant 0 : index
    %c0_18 = arith.constant 0 : index
    %24 = vector.load %arg8[%c0_17, %c0_18] : memref<8x1xf32, #tpu.memory_space<vmem>>, vector<8x1xf32>
    tpu.vector_store %arg8[%c0_17, %c0_18], %23 {strides = array<i32>} : memref<8x1xf32, #tpu.memory_space<vmem>>, vector<8x1xf32>,
    return
  }
  func.func @transform_0(%arg0: i32) -> (i32, i32) {
    %c0_i32 = arith.constant 0 : i32
    %c0_i32_0 = arith.constant 0 : i32
    return %arg0, %c0_i32 : i32, i32
  }
  func.func @transform_1(%arg0: i32) -> (i32, i32) {
    %c0_i32 = arith.constant 0 : i32
    %c0_i32_0 = arith.constant 0 : i32
    %c0_i32_1 = arith.constant 0 : i32
    return %c0_i32, %c0_i32_0 : i32, i32
  }
  func.func @transform_2(%arg0: i32) -> (i32, i32) {
    %c0_i32 = arith.constant 0 : i32
    %c0_i32_0 = arith.constant 0 : i32
    %c0_i32_1 = arith.constant 0 : i32
    return %c0_i32, %c0_i32_0 : i32, i32
  }
  func.func @transform_3(%arg0: i32) -> (i32, i32) {
    %c0_i32 = arith.constant 0 : i32
    %c0_i32_0 = arith.constant 0 : i32
    %c0_i32_1 = arith.constant 0 : i32
    return %c0_i32, %c0_i32_0 : i32, i32
  }
  func.func @transform_4(%arg0: i32) -> (i32, i32) {
    %c0_i32 = arith.constant 0 : i32
    %c0_i32_0 = arith.constant 0 : i32
    %c0_i32_1 = arith.constant 0 : i32
    return %c0_i32, %c0_i32_0 : i32, i32
  }
  func.func @transform_5(%arg0: i32) -> (i32, i32) {
    %c0_i32 = arith.constant 0 : i32
    %c0_i32_0 = arith.constant 0 : i32
    %c0_i32_1 = arith.constant 0 : i32
    return %c0_i32, %c0_i32_0 : i32, i32
  }
  func.func @transform_6(%arg0: i32) -> (i32, i32) {
    %c0_i32 = arith.constant 0 : i32
    %c0_i32_0 = arith.constant 0 : i32
    %c0_i32_1 = arith.constant 0 : i32
    return %c0_i32, %c0_i32_0 : i32, i32
  }
  func.func @transform_7(%arg0: i32) -> (i32, i32) {
    %c0_i32 = arith.constant 0 : i32
    %c0_i32_0 = arith.constant 0 : i32
    return %arg0, %c0_i32 : i32, i32
  }
}

</mosaic_0001>

<llo_original>
// kernel: tpu_custom_call.1
$region0: #{tpu_custom_call.1}
  #allocation0 [shape = 'u32[]', space=smem, size = 0x4, offset = 0x4, fixed_abs, tag = 'smem constant byte address 0x4 - core index']
  #allocation1 [shape = 'u32[72,128]{1,0:T(1,128)}', space=vmem, size = 0x9000, scoped, tag = 'internal scratch']
  #allocation2 [shape = 'f32[1,1]{1,0:T(1,128)S(1)}', space=vmem, size = 0x200, scoped, tag = 'scoped memory for tpu_custom_call.1']
  %s0 = inlined_call_operand.hbm [shape: bf16[8,24], index: 0, kind: input, shape index: {}]
  %s1 = inlined_call_operand.hbm [shape: bf16[24,128], index: 1, kind: input, shape index: {}]
  %s2 = inlined_call_operand.vmem [shape: f32[1,128], index: 2, kind: input, shape index: {}]
  %s3 = inlined_call_operand.hbm [shape: bf16[128,128], index: 3, kind: input, shape index: {}]
  %s4 = inlined_call_operand.vmem [shape: f32[1,128], index: 4, kind: input, shape index: {}]
  %s5 = inlined_call_operand.vmem [shape: f32[1,128], index: 5, kind: input, shape index: {}]
  %s6 = inlined_call_operand.<no memory space> [shape: f32[1,1], index: 6, kind: input, shape index: {}]
  %s7 = inlined_call_operand.vmem [shape: f32[8,1], index: 7, kind: output, shape index: {}]
  %s8 = sld [smem:[#allocation0]]
  $region50: #{tpu_custom_call.1} parent=0
    _
  %s10 = ssub.s32 1, %s8
  %s11 = scalar_select 0, %s10, %s8
  %v12 = vstv %s6
  %13 = vst [vmem:[#allocation2] sm:$0x1] %v12
  $region1: #{tpu_custom_call.1} parent=0
    #allocation3 [shape = 'u8[2048]{0}', space=vmem, size = 0x800, scoped, tag = 'input window, operand 0, single buffered']
    #allocation4 [shape = 's32[1]{0}', space=sflag, size = 0x4, scoped, tag = 'scoped memory for tpu_custom_call.1']
    #allocation5 [shape = 'u8[6144]{0}', space=vmem, size = 0x1800, scoped, tag = 'input window, operand 1, single buffered']
    #allocation6 [shape = 's32[1]{0}', space=sflag, size = 0x4, scoped, tag = 'scoped memory for tpu_custom_call.1']
    #allocation7 [shape = 'u8[32768]{0}', space=vmem, size = 0x8000, scoped, tag = 'input window, operand 3, single buffered']
    %14 = vsyncpa [#allocation4], 0
    %15 = vsyncpa [#allocation6], 0
    // Predicated region
    $region2: #{tpu_custom_call.1} parent=1 // pred_check
      _
    $region3: #{tpu_custom_call.1} parent=1 // pred_check_branch
      %17 = sbr.rel (0) target = $region5
    $region4: #{tpu_custom_call.1} parent=1 // pred_region
      %19 = vsyncadd [#allocation4], 0
      %s21 = sshll.u32 %s0, 4
      %s22 = int_to_ptr.hbm [resolvable:$true] %s21
      %s23 = sshll.u32 [#allocation3], 4
      %s24 = int_to_ptr.vmem [resolvable:$true] %s23
      %26 = dma.hbm_to_vmem [thread:$0]  %s22, 64, %s24, [#allocation4]
    $region5: #{tpu_custom_call.1} parent=1 // pred_fallthru
      _
    // Predicated region
    $region6: #{tpu_custom_call.1} parent=1 // pred_check
      _
    $region7: #{tpu_custom_call.1} parent=1 // pred_check_branch
      %28 = sbr.rel (0) target = $region9
    $region8: #{tpu_custom_call.1} parent=1 // pred_region
      %30 = vsyncadd [#allocation6], 0
      %s31 = sshll.u32 %s1, 4
      %s32 = int_to_ptr.hbm [resolvable:$true] %s31
      %s33 = sshll.u32 [#allocation5], 4
      %s34 = int_to_ptr.vmem [resolvable:$true] %s33
      %39 = dma.hbm_to_vmem [thread:$0]  %s32, 192, %s34, [#allocation6], 64, 64, 4
    $region9: #{tpu_custom_call.1} parent=1 // pred_fallthru
      _
    // Predicated region
    $region10: #{tpu_custom_call.1} parent=1 // pred_check
      _
    $region11: #{tpu_custom_call.1} parent=1 // pred_check_branch
      %41 = sbr.rel (0) target = $region13
    $region12: #{tpu_custom_call.1} parent=1 // pred_region
      _
    $region13: #{tpu_custom_call.1} parent=1 // pred_fallthru
      _
    // Predicated region
    $region14: #{tpu_custom_call.1} parent=1 // pred_check
      _
    $region15: #{tpu_custom_call.1} parent=1 // pred_check_branch
      %43 = sbr.rel (0) target = $region17
    $region16: #{tpu_custom_call.1} parent=1 // pred_region
      %45 = vsyncadd [#allocation6], 0
      %s46 = sshll.u32 %s3, 4
      %s47 = int_to_ptr.hbm [resolvable:$true] %s46
      %s48 = sshll.u32 [#allocation7], 4
      %s49 = int_to_ptr.vmem [resolvable:$true] %s48
      %54 = dma.hbm_to_vmem [thread:$0]  %s47, 1024, %s49, [#allocation6], 64, 64, 4
    $region17: #{tpu_custom_call.1} parent=1 // pred_fallthru
      _
    // Predicated region
    $region18: #{tpu_custom_call.1} parent=1 // pred_check
      _
    $region19: #{tpu_custom_call.1} parent=1 // pred_check_branch
      %56 = sbr.rel (0) target = $region21
    $region20: #{tpu_custom_call.1} parent=1 // pred_region
      _
    $region21: #{tpu_custom_call.1} parent=1 // pred_fallthru
      _
    // Predicated region
    $region22: #{tpu_custom_call.1} parent=1 // pred_check
      _
    $region23: #{tpu_custom_call.1} parent=1 // pred_check_branch
      %58 = sbr.rel (0) target = $region25
    $region24: #{tpu_custom_call.1} parent=1 // pred_region
      _
    $region25: #{tpu_custom_call.1} parent=1 // pred_fallthru
      _
    // Predicated region
    $region26: #{tpu_custom_call.1} parent=1 // pred_check
      _
    $region27: #{tpu_custom_call.1} parent=1 // pred_check_branch
      %60 = sbr.rel (0) target = $region29
    $region28: #{tpu_custom_call.1} parent=1 // pred_region
      _
    $region29: #{tpu_custom_call.1} parent=1 // pred_fallthru
      _
    // Predicated region
    $region30: #{tpu_custom_call.1} parent=1 // pred_check
      _
    $region31: #{tpu_custom_call.1} parent=1 // pred_check_branch
      %62 = sbr.rel (0) target = $region33
    $region32: #{tpu_custom_call.1} parent=1 // pred_region
      %64 = dma.done [#allocation4], 64
    $region33: #{tpu_custom_call.1} parent=1 // pred_fallthru
      _
    // Predicated region
    $region34: #{tpu_custom_call.1} parent=1 // pred_check
      _
    $region35: #{tpu_custom_call.1} parent=1 // pred_check_branch
      %66 = sbr.rel (0) target = $region37
    $region36: #{tpu_custom_call.1} parent=1 // pred_region
      %68 = dma.done [#allocation6], 192
    $region37: #{tpu_custom_call.1} parent=1 // pred_fallthru
      _
    // Predicated region
    $region38: #{tpu_custom_call.1} parent=1 // pred_check
      _
    $region39: #{tpu_custom_call.1} parent=1 // pred_check_branch
      %70 = sbr.rel (0) target = $region41
    $region40: #{tpu_custom_call.1} parent=1 // pred_region
      %72 = dma.done [#allocation6], 1024
    $region41: #{tpu_custom_call.1} parent=1 // pred_fallthru
      _
    %v74 = vld [vmem:[#allocation3] sm:$0xf]
    %v75 = vld [vmem:[#allocation5] sm:$0xf]
    %v76 = vld [vmem:[#allocation5 + $0x4] sm:$0xf]
    %v77 = vld [vmem:[#allocation5 + $0x8] sm:$0xf]
    %v78 = vld [vmem:[%s2] sm:$0x1]
    %v80 = vperm.slane %v78, 0
    %v85 = vunpack.c.l.b16 %v75
    %v86 = vunpack.c.l.b16 %v76
    %v87 = vunpack.c.l.b16 %v77
    %v88 = vpack.c.b16 %v86, %v85
    %v89 = vpack.c.b16 %v87, %v87
    %vm91 = vcmask 195584
    %v93 = vsel %vm91, %v74, 0
    %vm95 = vcmask 1043456
    %v97 = vsel %vm95, %v89, 0
    %99 = vmatpush.bf16.msra.mxu0 0
    %100 = vmatpush.bf16.msra.mxu0 0
    %101 = vmatpush.bf16.msra.mxu0 0
    %102 = vmatpush.bf16.msra.mxu0 0
    %103 = vmatpush.bf16.msra.mxu0 0
    %104 = vmatpush.bf16.msra.mxu0 0
    %105 = vmatpush.bf16.msra.mxu0 %v97
    %106 = vmatpush.bf16.msra.mxu0 %v88
    %107 = vmatmul.bf16.gmra.mxu0 %v93
    %v108 = vpop.f32.mrf.mxu0
    %v109 = vadd.f32 %v80, %v108
    %v110 = vpop.f32.mrf.mxu0
    %111 = vdwg.mxu0
    %v112 = vmax.f32 %v109, 0.0
    %v113 = vpack.c.bf16 %v112, %v112
    %v114 = vld [vmem:[#allocation7] sm:$0xf]
    %v115 = vld [vmem:[#allocation7 + $0x4] sm:$0xf]
    %v116 = vld [vmem:[#allocation7 + $0x8] sm:$0xf]
    %v117 = vld [vmem:[#allocation7 + $0xc] sm:$0xf]
    %v118 = vld [vmem:[#allocation7 + $0x10] sm:$0xf]
    %v119 = vld [vmem:[#allocation7 + $0x14] sm:$0xf]
    %v120 = vld [vmem:[#allocation7 + $0x18] sm:$0xf]
    %v121 = vld [vmem:[#allocation7 + $0x1c] sm:$0xf]
    %v122 = vld [vmem:[#allocation7 + $0x20] sm:$0xf]
    %v123 = vld [vmem:[#allocation7 + $0x24] sm:$0xf]
    %v124 = vld [vmem:[#allocation7 + $0x28] sm:$0xf]
    %v125 = vld [vmem:[#allocation7 + $0x2c] sm:$0xf]
    %v126 = vld [vmem:[#allocation7 + $0x30] sm:$0xf]
    %v127 = vld [vmem:[#allocation7 + $0x34] sm:$0xf]
    %v128 = vld [vmem:[#allocation7 + $0x38] sm:$0xf]
    %v129 = vld [vmem:[#allocation7 + $0x3c] sm:$0xf]
    %v130 = vld [vmem:[%s4] sm:$0x1]
    %v132 = vperm.slane %v130, 0
    %v150 = vunpack.c.l.b16 %v114
    %v151 = vunpack.c.l.b16 %v115
    %v152 = vunpack.c.l.b16 %v116
    %v153 = vunpack.c.l.b16 %v117
    %v154 = vunpack.c.l.b16 %v118
    %v155 = vunpack.c.l.b16 %v119
    %v156 = vunpack.c.l.b16 %v120
    %v157 = vunpack.c.l.b16 %v121
    %v158 = vunpack.c.l.b16 %v122
    %v159 = vunpack.c.l.b16 %v123
    %v160 = vunpack.c.l.b16 %v124
    %v161 = vunpack.c.l.b16 %v125
    %v162 = vunpack.c.l.b16 %v126
    %v163 = vunpack.c.l.b16 %v127
    %v164 = vunpack.c.l.b16 %v128
    %v165 = vunpack.c.l.b16 %v129
    %v166 = vpack.c.b16 %v151, %v150
    %v167 = vpack.c.b16 %v153, %v152
    %v168 = vpack.c.b16 %v155, %v154
    %v169 = vpack.c.b16 %v157, %v156
    %v170 = vpack.c.b16 %v159, %v158
    %v171 = vpack.c.b16 %v161, %v160
    %v172 = vpack.c.b16 %v163, %v162
    %v173 = vpack.c.b16 %v165, %v164
    %182 = vmatpush.bf16.msra.mxu0 %v173
    %183 = vmatpush.bf16.msra.mxu0 %v172
    %184 = vmatpush.bf16.msra.mxu0 %v171
    %185 = vmatpush.bf16.msra.mxu0 %v170
    %186 = vmatpush.bf16.msra.mxu0 %v169
    %187 = vmatpush.bf16.msra.mxu0 %v168
    %188 = vmatpush.bf16.msra.mxu0 %v167
    %189 = vmatpush.bf16.msra.mxu0 %v166
    %190 = vmatmul.bf16.gmra.mxu0 %v113
    %v191 = vpop.f32.mrf.mxu0
    %v192 = vadd.f32 %v132, %v191
    %v193 = vpop.f32.mrf.mxu0
    %194 = vdwg.mxu0
    %v195 = vmax.f32 %v192, 0.0
    %v196 = vld [vmem:[%s5] sm:$0x1]
    %v198 = vperm.slane %v196, 0
    %v200 = vmul.f32 %v195, %v198
    %201 = vadd.xlane.f32.xlu0 %v200
    %v202 = vpop.xlane.xlu0 %201
    %v203 = vld [vmem:[#allocation2] sm:$0x1]
    %v205 = vperm.slane %v203, 0
    %v207 = vadd.f32 %v202, %v205
    %vm208 = vcmask 7168
    %209 = vst.msk [vmem:[%s7] sm:$0xff] %vm208, %v207
    // Predicated region
    $region42: #{tpu_custom_call.1} parent=1 // pred_check
      _
    $region43: #{tpu_custom_call.1} parent=1 // pred_check_branch
      %211 = sbr.rel (0) target = $region45
    $region44: #{tpu_custom_call.1} parent=1 // pred_region
      _
    $region45: #{tpu_custom_call.1} parent=1 // pred_fallthru
      _
    // Predicated region
    $region46: #{tpu_custom_call.1} parent=1 // pred_check
      _
    $region47: #{tpu_custom_call.1} parent=1 // pred_check_branch
      %213 = sbr.rel (0) target = $region49
    $region48: #{tpu_custom_call.1} parent=1 // pred_region
      _
    $region49: #{tpu_custom_call.1} parent=1 // pred_fallthru
      _
    %214 = vsyncpa [#allocation4], 1
    %215 = vsyncpa [#allocation6], 1

</llo_original>
